<compile_context>
chip_gen: v5e
topology: v5e:2x2
jax: 0.10.0
libtpu: 0.0.40
codegen_flags: <defaults>
</compile_context>

<pallas_src>
import math
import numpy as np

import jax
import jax.numpy as jnp
from jax.experimental import pallas as pl
from jax.experimental.pallas import tpu as pltpu

_EPS = 1e-5


def _pad_channels(c, wdim):
    """Smallest padded channel count >= c such that wdim * c_pad is a multiple of 128
    (falls back to multiples of 8 if that would require pathological padding)."""
    step = 128 // math.gcd(wdim, 128)
    if step > 32:
        step = 8
    return int(-(-c // step) * step)


# ----------------------------------------------------------------------------
# Stage 1: conv1 (3x3, pad 1, stride s) + bias, shortcut, BN1 partial stats
# ----------------------------------------------------------------------------
def _make_stage1_kernel(*, s, Ho, use_1x1, mxu_dtype):
    f32 = jnp.float32

    def mm(a, w):  # MXU GEMM, f32 accumulation (weights already in mxu_dtype)
        return jnp.dot(a.astype(mxu_dtype), w, preferred_element_type=f32)

    def kernel(x_ref, t1_ref, b1_ref, *rest):
        if use_1x1:
            t3_ref, b3_ref, y1_ref, sc_ref, s_sum_ref, s_sq_ref = rest
        else:
            y1_ref, sc_ref, s_sum_ref, s_sq_ref = rest

        x = x_ref[...]                        # (tileN, s, Q, W*Cip)  H-phase layout
        tn = x.shape[0]
        l0 = x.shape[-1]
        l1 = t1_ref.shape[-1]

        def tap(kh):  # padded rows  s*ho + kh  -> contiguous slice of phase kh % s
            return x[:, kh % s, kh // s: kh // s + Ho, :].reshape(tn * Ho, l0)

        t1 = t1_ref[...]                      # (3, W*Cip, Wo*Cop)
        y1 = mm(tap(0), t1[0])
        y1 += mm(tap(1), t1[1])
        y1 += mm(tap(2), t1[2])
        y1 = y1 + b1_ref[...]                 # (1, L1) broadcast, f32

        y1_ref[...] = y1.reshape(tn, Ho, l1)
        s_sum_ref[...] = jnp.sum(y1, axis=0, keepdims=True).reshape(1, 1, l1)
        s_sq_ref[...] = jnp.sum(y1 * y1, axis=0, keepdims=True).reshape(1, 1, l1)

        if use_1x1:                           # strided 1x1 projection shortcut
            sc = mm(tap(1), t3_ref[...]) + b3_ref[...]
        else:                                 # identity shortcut (s==1, Cin==Cout)
            sc = tap(1)
        sc_ref[...] = sc.reshape(tn, Ho, l1)

    return kernel


# ----------------------------------------------------------------------------
# Stage 2: bn1-apply + relu + conv2 (3x3, pad 1, stride 1) + bias, BN2 partials
# ----------------------------------------------------------------------------
def _make_stage2_kernel(*, Ho, mxu_dtype):
    f32 = jnp.float32

    def mm(a, w):
        return jnp.dot(a.astype(mxu_dtype), w, preferred_element_type=f32)

    def kernel(y1_ref, scale1_ref, shift1_ref, t2_ref, b2_ref,
               y2_ref, s_sum_ref, s_sq_ref, apad_ref):
        tn, _, l1 = y1_ref.shape
        a1 = jnp.maximum(y1_ref[...] * scale1_ref[...] + shift1_ref[...], 0.0)

        # Zero-padded (in H) copy of a1 in VMEM scratch: conv2's three H taps are
        # plain contiguous slices (no shift matmuls, no rolls).
        zrow = jnp.zeros((tn, 1, l1), f32)
        apad_ref[:, 0:1, :] = zrow
        apad_ref[:, Ho + 1:Ho + 2, :] = zrow
        apad_ref[:, 1:Ho + 1, :] = a1

        t2 = t2_ref[...]                      # (3, L1, L1)
        y2 = mm(apad_ref[:, 0:Ho, :].reshape(tn * Ho, l1), t2[0])
        y2 += mm(apad_ref[:, 1:Ho + 1, :].reshape(tn * Ho, l1), t2[1])
        y2 += mm(apad_ref[:, 2:Ho + 2, :].reshape(tn * Ho, l1), t2[2])
        y2 = y2 + b2_ref[...]

        y2_ref[...] = y2.reshape(tn, Ho, l1)
        s_sum_ref[...] = jnp.sum(y2, axis=0, keepdims=True).reshape(1, 1, l1)
        s_sq_ref[...] = jnp.sum(y2 * y2, axis=0, keepdims=True).reshape(1, 1, l1)

    return kernel


# ----------------------------------------------------------------------------
# Stage 3: bn2-apply + residual add + relu (pure element-wise, lane-dense)
# ----------------------------------------------------------------------------
def _stage3_kernel(y2_ref, short_ref, scale2_ref, shift2_ref, o_ref):
    o_ref[...] = jnp.maximum(
        y2_ref[...] * scale2_ref[...] + shift2_ref[...] + short_ref[...], 0.0)


# ----------------------------------------------------------------------------
# Residual block forward (Pallas-backed)
# ----------------------------------------------------------------------------
def residual_forward(x_nchw, params, *, use_1x1_conv, strides,
                     mxu_dtype=jnp.bfloat16):
    f32 = jnp.float32
    N, Cin, H, W = map(int, x_nchw.shape)
    Cout = int(params["w1"].shape[-1])
    s = int(strides)
    if s not in (1, 2):
        raise ValueError("strides must be 1 or 2")
    if H % s or W % s:
        raise ValueError("H and W must be divisible by strides")
    if not use_1x1_conv and (s != 1 or Cin != Cout):
        raise ValueError("identity shortcut requires strides == 1 and Cin == Cout")
    Ho, Wo = H // s, W // s

    # Channel padding -> lane-dense minor dims (multiples of 128 here).
    Cip = _pad_channels(Cin, W)
    Cop = _pad_channels(Cout, Wo)
    L0, L1 = W * Cip, Wo * Cop

    # ---- activations: NCHW -> H-phase layout (N, s, Q, W*Cip) ------------------
    # phase r, row q holds zero-padded image row s*q + r  (padded row 0 is the top
    # zero row) so every conv1/shortcut H tap is a contiguous slice in the kernel.
    Q = Ho + 2 // s
    x = jnp.transpose(x_nchw, (0, 2, 3, 1)).astype(f32)              # NHWC
    x = jnp.pad(x, ((0, 0), (0, 0), (0, 0), (0, Cip - Cin)))
    x = x.reshape(N, H, L0)
    x = jnp.pad(x, ((0, 0), (1, s * Q - H - 1), (0, 0)))             # zero pad in H
    x_ph = x.reshape(N, Q, s, L0).transpose(0, 2, 1, 3)              # (N, s, Q, L0)

    # ---- weights: fold W taps / W stride / W padding into per-H-tap operators ----
    def pad_w(w, ci, co, cip, cop):
        return jnp.pad(w.astype(f32), ((0, 0), (0, 0), (0, cip - ci), (0, cop - co)))

    w1p = pad_w(params["w1"], Cin, Cout, Cip, Cop)                   # (3,3,Cip,Cop)
    w2p = pad_w(params["w2"], Cout, Cout, Cop, Cop)

    kw = np.arange(3)[None, :, None]
    m1 = (np.arange(W)[:, None, None] ==
          s * np.arange(Wo)[None, None, :] + kw - 1).astype(np.float32)   # (W,3,Wo)
    t1 = jnp.einsum("pkj,hkio->hpijo", m1, w1p).reshape(3, L0, L1).astype(mxu_dtype)
    m2 = (np.arange(Wo)[:, None, None] ==
          np.arange(Wo)[None, None, :] + kw - 1).astype(np.float32)       # (Wo,3,Wo)
    t2 = jnp.einsum("pkj,hkio->hpijo", m2, w2p).reshape(3, L1, L1).astype(mxu_dtype)
    if use_1x1_conv:
        w3p = jnp.pad(params["w3"].reshape(Cin, Cout).astype(f32),
                      ((0, Cip - Cin), (0, Cop - Cout)))
        m3 = (np.arange(W)[:, None] == s * np.arange(Wo)[None, :]).astype(np.float32)
        t3 = jnp.einsum("pj,io->pijo", m3, w3p).reshape(L0, L1).astype(mxu_dtype)

    def pad_c(v):
        return jnp.pad(v.astype(f32), (0, Cop - Cout))

    def fold(v_cop):  # per-channel (Cop,) -> lane-folded (1, Wo*Cop), lane = (wo, c)
        return jnp.tile(v_cop, Wo).reshape(1, L1)

    b1f = fold(pad_c(params["b1"]))
    b2f = fold(pad_c(params["b2"]))
    g1p, be1p = pad_c(params["g1"]), pad_c(params["be1"])
    g2p, be2p = pad_c(params["g2"]), pad_c(params["be2"])

    # ---- batch tiling: largest divisor of N under a per-step VMEM budget --------
    per_img = 4 * (s * Q * L0 + 4 * Ho * L1 + (Ho + 2) * L1)
    tile = 1
    for cand in range(1, N + 1):
        if N % cand == 0 and 2 * cand * per_img <= 8 * 2 ** 20:
            tile = cand
    G = N // tile

    cparams = pltpu.CompilerParams(dimension_semantics=("parallel",),
                                   vmem_limit_bytes=32 * 1024 * 1024)

    x_spec = pl.BlockSpec((tile, s, Q, L0), lambda b: (b, 0, 0, 0))
    act_spec = pl.BlockSpec((tile, Ho, L1), lambda b: (b, 0, 0))
    vec_spec = pl.BlockSpec((1, L1), lambda b: (0, 0))
    stat_spec = pl.BlockSpec((1, 1, L1), lambda b: (b, 0, 0))

    # ---------------- stage 1: conv1 + shortcut + BN1 partial stats --------------
    in_specs_a = [x_spec, pl.BlockSpec((3, L0, L1), lambda b: (0, 0, 0)), vec_spec]
    args_a = [x_ph, t1, b1f]
    if use_1x1_conv:
        b3f = fold(pad_c(params["b3"]))
        in_specs_a += [pl.BlockSpec((L0, L1), lambda b: (0, 0)), vec_spec]
        args_a += [t3, b3f]

    y1, short, s1_sum, s1_sq = pl.pallas_call(
        _make_stage1_kernel(s=s, Ho=Ho, use_1x1=use_1x1_conv, mxu_dtype=mxu_dtype),
        grid=(G,),
        in_specs=in_specs_a,
        out_specs=(act_spec, act_spec, stat_spec, stat_spec),
        out_shape=(jax.ShapeDtypeStruct((N, Ho, L1), f32),
                   jax.ShapeDtypeStruct((N, Ho, L1), f32),
                   jax.ShapeDtypeStruct((G, 1, L1), f32),
                   jax.ShapeDtypeStruct((G, 1, L1), f32)),
        compiler_params=cparams,
    )(*args_a)

    count = float(N * Ho * Wo)

    def bn_fold(sum_p, sq_p, gamma, beta):   # tiny per-channel glue in JAX
        ssum = jnp.sum(sum_p, axis=(0, 1)).reshape(Wo, Cop).sum(axis=0)
        ssq = jnp.sum(sq_p, axis=(0, 1)).reshape(Wo, Cop).sum(axis=0)
        mean = ssum / count
        var = jnp.maximum(ssq / count - mean * mean, 0.0)
        scale = gamma * jax.lax.rsqrt(var + _EPS)
        shift = beta - mean * scale
        return fold(scale), fold(shift)

    scale1f, shift1f = bn_fold(s1_sum, s1_sq, g1p, be1p)

    # ---------------- stage 2: bn1 + relu + conv2 + BN2 partial stats ------------
    y2, s2_sum, s2_sq = pl.pallas_call(
        _make_stage2_kernel(Ho=Ho, mxu_dtype=mxu_dtype),
        grid=(G,),
        in_specs=[act_spec, vec_spec, vec_spec,
                  pl.BlockSpec((3, L1, L1), lambda b: (0, 0, 0)), vec_spec],
        out_specs=(act_spec, stat_spec, stat_spec),
        out_shape=(jax.ShapeDtypeStruct((N, Ho, L1), f32),
                   jax.ShapeDtypeStruct((G, 1, L1), f32),
                   jax.ShapeDtypeStruct((G, 1, L1), f32)),
        scratch_shapes=[pltpu.VMEM((tile, Ho + 2, L1), f32)],
        compiler_params=cparams,
    )(y1, scale1f, shift1f, t2, b2f)

    scale2f, shift2f = bn_fold(s2_sum, s2_sq, g2p, be2p)

    # ---------------- stage 3: bn2 + residual add + relu -------------------------
    out2 = pl.pallas_call(
        _stage3_kernel,
        grid=(G,),
        in_specs=[act_spec, act_spec, vec_spec, vec_spec],
        out_specs=act_spec,
        out_shape=jax.ShapeDtypeStruct((N, Ho, L1), f32),
        compiler_params=cparams,
    )(y2, short, scale2f, shift2f)

    out = out2.reshape(N, Ho, Wo, Cop)[:, :, :, :Cout]
    return jnp.transpose(out, (0, 3, 1, 2))                  # NCHW


# ----------------------------------------------------------------------------
# Pure-JAX reference (correctness check)
# ----------------------------------------------------------------------------
def residual_reference(x_nchw, p, *, use_1x1_conv, strides, eps=_EPS):
    def conv(x, w_hwio, b, s, k):
        pad = (1, 1) if k == 3 else (0, 0)
        y = jax.lax.conv_general_dilated(
            x, w_hwio, window_strides=(s, s), padding=[pad, pad],
            dimension_numbers=("NCHW", "HWIO", "NCHW"))
        return y + b[None, :, None, None]

    def bn(y, g, be):
        mean = jnp.mean(y, axis=(0, 2, 3), keepdims=True)
        var = jnp.mean((y - mean) ** 2, axis=(0, 2, 3), keepdims=True)
        return (g[None, :, None, None] * (y - mean) * jax.lax.rsqrt(var + eps)
                + be[None, :, None, None])

    y = jax.nn.relu(bn(conv(x_nchw, p["w1"], p["b1"], strides, 3), p["g1"], p["be1"]))
    y = bn(conv(y, p["w2"], p["b2"], 1, 3), p["g2"], p["be2"])
    sc = conv(x_nchw, p["w3"], p["b3"], strides, 1) if use_1x1_conv else x_nchw
    return jax.nn.relu(y + sc)


def _make_params(key, Cin, Cout, use_1x1):
    ks = jax.random.split(key, 10)
    p = {
        "w1": 0.1 * jax.random.normal(ks[0], (3, 3, Cin, Cout), jnp.float32),
        "b1": 0.1 * jax.random.normal(ks[1], (Cout,), jnp.float32),
        "w2": 0.1 * jax.random.normal(ks[2], (3, 3, Cout, Cout), jnp.float32),
        "b2": 0.1 * jax.random.normal(ks[3], (Cout,), jnp.float32),
        "g1": 1.0 + 0.1 * jax.random.normal(ks[4], (Cout,), jnp.float32),
        "be1": 0.1 * jax.random.normal(ks[5], (Cout,), jnp.float32),
        "g2": 1.0 + 0.1 * jax.random.normal(ks[6], (Cout,), jnp.float32),
        "be2": 0.1 * jax.random.normal(ks[7], (Cout,), jnp.float32),
    }
    if use_1x1:
        p["w3"] = 0.1 * jax.random.normal(ks[8], (1, 1, Cin, Cout), jnp.float32)
        p["b3"] = 0.1 * jax.random.normal(ks[9], (Cout,), jnp.float32)
    return p


if __name__ == "__main__":
    key = jax.random.PRNGKey(0)
    k_x, k_p1, k_p2 = jax.random.split(key, 3)

    # Config A: downsampling block (Cin != Cout, stride 2, 1x1 projection shortcut)
    N, Cin, H, W, Cout = 2, 4, 16, 16, 8
    params_a = _make_params(k_p1, Cin, Cout, use_1x1=True)
    x_a = jax.random.normal(k_x, (N, Cin, H, W), jnp.float32)
    ref_a = jax.block_until_ready(
        residual_reference(x_a, params_a, use_1x1_conv=True, strides=2))

    out_a32 = jax.block_until_ready(
        residual_forward(x_a, params_a, use_1x1_conv=True, strides=2,
                         mxu_dtype=jnp.float32))
    assert out_a32.shape == (N, Cout, H // 2, W // 2), out_a32.shape
    assert jnp.allclose(out_a32, ref_a, rtol=2e-3, atol=2e-3), \
        float(jnp.max(jnp.abs(out_a32 - ref_a)))

    out_a16 = jax.block_until_ready(        # default path: bf16 MXU operands
        residual_forward(x_a, params_a, use_1x1_conv=True, strides=2))
    assert jnp.allclose(out_a16, ref_a, rtol=5e-2, atol=5e-2), \
        float(jnp.max(jnp.abs(out_a16 - ref_a)))

    # Config B: identity-shortcut block (Cin == Cout, stride 1)
    params_b = _make_params(k_p2, Cout, Cout, use_1x1=False)
    x_b = jax.random.normal(k_x, (N, Cout, H, W), jnp.float32)
    ref_b = jax.block_until_ready(
        residual_reference(x_b, params_b, use_1x1_conv=False, strides=1))

    out_b32 = jax.block_until_ready(
        residual_forward(x_b, params_b, use_1x1_conv=False, strides=1,
                         mxu_dtype=jnp.float32))
    assert out_b32.shape == (N, Cout, H, W), out_b32.shape
    assert jnp.allclose(out_b32, ref_b, rtol=2e-3, atol=2e-3), \
        float(jnp.max(jnp.abs(out_b32 - ref_b)))

    out_b16 = jax.block_until_ready(
        residual_forward(x_b, params_b, use_1x1_conv=False, strides=1))
    assert jnp.allclose(out_b16, ref_b, rtol=5e-2, atol=5e-2), \
        float(jnp.max(jnp.abs(out_b16 - ref_b)))

    print("KERNEL_OK")
</pallas_src>

<mosaic_0001>
module attributes {stable_mosaic.version = 11 : i64} {
  func.func @kernel(%arg0: i32, %arg1: memref<2x2x9x128xf32, #tpu.memory_space<vmem>>, %arg2: memref<3x128x128xf32, #tpu.memory_space<vmem>>, %arg3: memref<1x128xf32, #tpu.memory_space<vmem>>, %arg4: memref<128x128xf32, #tpu.memory_space<vmem>>, %arg5: memref<1x128xf32, #tpu.memory_space<vmem>>, %arg6: memref<2x8x128xf32, #tpu.memory_space<vmem>>, %arg7: memref<2x8x128xf32, #tpu.memory_space<vmem>>, %arg8: memref<1x1x128xf32, #tpu.memory_space<vmem>>, %arg9: memref<1x1x128xf32, #tpu.memory_space<vmem>>) attributes {dimension_semantics = [#tpu.dimension_semantics<parallel>], iteration_bounds = array<i64: 1>, scalar_prefetch = 0 : i64, scratch_operands = 0 : i64, tpu.core_type = #tpu.core_type<tc>, window_params = [{transform_indices = @transform_0, window_bounds = array<i64: 2, 2, 9, 128>}, {pipeline_mode = #tpu.pipeline_mode<synchronous>, transform_indices = @transform_1, window_bounds = array<i64: 3, 128, 128>}, {pipeline_mode = #tpu.pipeline_mode<synchronous>, transform_indices = @transform_2, window_bounds = array<i64: 1, 128>}, {pipeline_mode = #tpu.pipeline_mode<synchronous>, transform_indices = @transform_3, window_bounds = array<i64: 128, 128>}, {pipeline_mode = #tpu.pipeline_mode<synchronous>, transform_indices = @transform_4, window_bounds = array<i64: 1, 128>}, {transform_indices = @transform_5, window_bounds = array<i64: 2, 8, 128>}, {transform_indices = @transform_6, window_bounds = array<i64: 2, 8, 128>}, {transform_indices = @transform_7, window_bounds = array<i64: 1, 1, 128>}, {transform_indices = @transform_8, window_bounds = array<i64: 1, 1, 128>}]} {
    %c0 = arith.constant 0 : index
    %c0_0 = arith.constant 0 : index
    %c0_1 = arith.constant 0 : index
    %c0_2 = arith.constant 0 : index
    %0 = vector.load %arg1[%c0, %c0_0, %c0_1, %c0_2] : memref<2x2x9x128xf32, #tpu.memory_space<vmem>>, vector<2x2x9x128xf32>
    %c0_3 = arith.constant 0 : index
    %c0_4 = arith.constant 0 : index
    %c0_5 = arith.constant 0 : index
    %1 = vector.load %arg2[%c0_3, %c0_4, %c0_5] : memref<3x128x128xf32, #tpu.memory_space<vmem>>, vector<3x128x128xf32>
    %2 = vector.extract_strided_slice %0 {offsets = [0, 0, 0, 0], sizes = [2, 1, 8, 128], strides = [1, 1, 1, 1]} : vector<2x2x9x128xf32> to vector<2x1x8x128xf32>
    %3 = vector.shape_cast %2 : vector<2x1x8x128xf32> to vector<2x8x128xf32>
    %4 = vector.shape_cast %3 : vector<2x8x128xf32> to vector<16x128xf32>
    %5 = vector.extract_strided_slice %1 {offsets = [0, 0, 0], sizes = [1, 128, 128], strides = [1, 1, 1]} : vector<3x128x128xf32> to vector<1x128x128xf32>
    %6 = vector.shape_cast %5 : vector<1x128x128xf32> to vector<128x128xf32>
    %cst = arith.constant dense<0.000000e+00> : vector<16x128xf32>
    %7 = tpu.matmul %4, %6, %cst {dimension_numbers = #tpu.dot_dimension_numbers<[1], [0], [0], [1], [0, 0, 1, 1], [], []>} : vector<16x128xf32>, vector<128x128xf32>, vector<16x128xf32> -> vector<16x128xf32>
    %8 = vector.extract_strided_slice %0 {offsets = [0, 1, 0, 0], sizes = [2, 1, 8, 128], strides = [1, 1, 1, 1]} : vector<2x2x9x128xf32> to vector<2x1x8x128xf32>
    %9 = vector.shape_cast %8 : vector<2x1x8x128xf32> to vector<2x8x128xf32>
    %10 = vector.shape_cast %9 : vector<2x8x128xf32> to vector<16x128xf32>
    %11 = vector.extract_strided_slice %1 {offsets = [1, 0, 0], sizes = [1, 128, 128], strides = [1, 1, 1]} : vector<3x128x128xf32> to vector<1x128x128xf32>
    %12 = vector.shape_cast %11 : vector<1x128x128xf32> to vector<128x128xf32>
    %cst_6 = arith.constant dense<0.000000e+00> : vector<16x128xf32>
    %13 = tpu.matmul %10, %12, %cst_6 {dimension_numbers = #tpu.dot_dimension_numbers<[1], [0], [0], [1], [0, 0, 1, 1], [], []>} : vector<16x128xf32>, vector<128x128xf32>, vector<16x128xf32> -> vector<16x128xf32>
    %14 = arith.addf %7, %13 : vector<16x128xf32>
    %15 = vector.extract_strided_slice %0 {offsets = [0, 0, 1, 0], sizes = [2, 1, 8, 128], strides = [1, 1, 1, 1]} : vector<2x2x9x128xf32> to vector<2x1x8x128xf32>
    %16 = vector.shape_cast %15 : vector<2x1x8x128xf32> to vector<2x8x128xf32>
    %17 = vector.shape_cast %16 : vector<2x8x128xf32> to vector<16x128xf32>
    %18 = vector.extract_strided_slice %1 {offsets = [2, 0, 0], sizes = [1, 128, 128], strides = [1, 1, 1]} : vector<3x128x128xf32> to vector<1x128x128xf32>
    %19 = vector.shape_cast %18 : vector<1x128x128xf32> to vector<128x128xf32>
    %cst_7 = arith.constant dense<0.000000e+00> : vector<16x128xf32>
    %20 = tpu.matmul %17, %19, %cst_7 {dimension_numbers = #tpu.dot_dimension_numbers<[1], [0], [0], [1], [0, 0, 1, 1], [], []>} : vector<16x128xf32>, vector<128x128xf32>, vector<16x128xf32> -> vector<16x128xf32>
    %21 = arith.addf %14, %20 : vector<16x128xf32>
    %c0_8 = arith.constant 0 : index
    %c0_9 = arith.constant 0 : index
    %22 = vector.load %arg3[%c0_8, %c0_9] : memref<1x128xf32, #tpu.memory_space<vmem>>, vector<1x128xf32>
    %23 = vector.broadcast %22 : vector<1x128xf32> to vector<16x128xf32>
    %24 = arith.addf %21, %23 : vector<16x128xf32>
    %25 = vector.shape_cast %24 : vector<16x128xf32> to vector<2x8x128xf32>
    %c0_10 = arith.constant 0 : index
    %c0_11 = arith.constant 0 : index
    %c0_12 = arith.constant 0 : index
    %26 = vector.load %arg6[%c0_10, %c0_11, %c0_12] : memref<2x8x128xf32, #tpu.memory_space<vmem>>, vector<2x8x128xf32>
    tpu.vector_store %arg6[%c0_10, %c0_11, %c0_12], %25 {strides = array<i32>} : memref<2x8x128xf32, #tpu.memory_space<vmem>>, vector<2x8x128xf32>,
    %cst_13 = arith.constant dense<0.000000e+00> : vector<128xf32>
    %27 = vector.multi_reduction <add>, %24, %cst_13 [0] : vector<16x128xf32> to vector<128xf32>
    %28 = vector.shape_cast %27 : vector<128xf32> to vector<1x128xf32>
    %29 = vector.shape_cast %28 : vector<1x128xf32> to vector<1x1x128xf32>
    %c0_14 = arith.constant 0 : index
    %c0_15 = arith.constant 0 : index
    %c0_16 = arith.constant 0 : index
    %30 = vector.load %arg8[%c0_14, %c0_15, %c0_16] : memref<1x1x128xf32, #tpu.memory_space<vmem>>, vector<1x1x128xf32>
    tpu.vector_store %arg8[%c0_14, %c0_15, %c0_16], %29 {strides = array<i32>} : memref<1x1x128xf32, #tpu.memory_space<vmem>>, vector<1x1x128xf32>,
    %31 = arith.mulf %24, %24 : vector<16x128xf32>
    %cst_17 = arith.constant dense<0.000000e+00> : vector<128xf32>
    %32 = vector.multi_reduction <add>, %31, %cst_17 [0] : vector<16x128xf32> to vector<128xf32>
    %33 = vector.shape_cast %32 : vector<128xf32> to vector<1x128xf32>
    %34 = vector.shape_cast %33 : vector<1x128xf32> to vector<1x1x128xf32>
    %c0_18 = arith.constant 0 : index
    %c0_19 = arith.constant 0 : index
    %c0_20 = arith.constant 0 : index
    %35 = vector.load %arg9[%c0_18, %c0_19, %c0_20] : memref<1x1x128xf32, #tpu.memory_space<vmem>>, vector<1x1x128xf32>
    tpu.vector_store %arg9[%c0_18, %c0_19, %c0_20], %34 {strides = array<i32>} : memref<1x1x128xf32, #tpu.memory_space<vmem>>, vector<1x1x128xf32>,
    %36 = vector.extract_strided_slice %0 {offsets = [0, 1, 0, 0], sizes = [2, 1, 8, 128], strides = [1, 1, 1, 1]} : vector<2x2x9x128xf32> to vector<2x1x8x128xf32>
    %37 = vector.shape_cast %36 : vector<2x1x8x128xf32> to vector<2x8x128xf32>
    %38 = vector.shape_cast %37 : vector<2x8x128xf32> to vector<16x128xf32>
    %c0_21 = arith.constant 0 : index
    %c0_22 = arith.constant 0 : index
    %39 = vector.load %arg4[%c0_21, %c0_22] : memref<128x128xf32, #tpu.memory_space<vmem>>, vector<128x128xf32>
    %cst_23 = arith.constant dense<0.000000e+00> : vector<16x128xf32>
    %40 = tpu.matmul %38, %39, %cst_23 {dimension_numbers = #tpu.dot_dimension_numbers<[1], [0], [0], [1], [0, 0, 1, 1], [], []>} : vector<16x128xf32>, vector<128x128xf32>, vector<16x128xf32> -> vector<16x128xf32>
    %c0_24 = arith.constant 0 : index
    %c0_25 = arith.constant 0 : index
    %41 = vector.load %arg5[%c0_24, %c0_25] : memref<1x128xf32, #tpu.memory_space<vmem>>, vector<1x128xf32>
    %42 = vector.broadcast %41 : vector<1x128xf32> to vector<16x128xf32>
    %43 = arith.addf %40, %42 : vector<16x128xf32>
    %44 = vector.shape_cast %43 : vector<16x128xf32> to vector<2x8x128xf32>
    %c0_26 = arith.constant 0 : index
    %c0_27 = arith.constant 0 : index
    %c0_28 = arith.constant 0 : index
    %45 = vector.load %arg7[%c0_26, %c0_27, %c0_28] : memref<2x8x128xf32, #tpu.memory_space<vmem>>, vector<2x8x128xf32>
    tpu.vector_store %arg7[%c0_26, %c0_27, %c0_28], %44 {strides = array<i32>} : memref<2x8x128xf32, #tpu.memory_space<vmem>>, vector<2x8x128xf32>,
    return
  }
  func.func @transform_0(%arg0: i32) -> (i32, i32, i32, i32) {
    %c0_i32 = arith.constant 0 : i32
    %c0_i32_0 = arith.constant 0 : i32
    %c0_i32_1 = arith.constant 0 : i32
    %c0_i32_2 = arith.constant 0 : i32
    return %arg0, %c0_i32, %c0_i32_0, %c0_i32_1 : i32, i32, i32, i32
  }
  func.func @transform_1(%arg0: i32) -> (i32, i32, i32) {
    %c0_i32 = arith.constant 0 : i32
    %c0_i32_0 = arith.constant 0 : i32
    %c0_i32_1 = arith.constant 0 : i32
    %c0_i32_2 = arith.constant 0 : i32
    return %c0_i32, %c0_i32_0, %c0_i32_1 : i32, i32, i32
  }
  func.func @transform_2(%arg0: i32) -> (i32, i32) {
    %c0_i32 = arith.constant 0 : i32
    %c0_i32_0 = arith.constant 0 : i32
    %c0_i32_1 = arith.constant 0 : i32
    return %c0_i32, %c0_i32_0 : i32, i32
  }
  func.func @transform_3(%arg0: i32) -> (i32, i32) {
    %c0_i32 = arith.constant 0 : i32
    %c0_i32_0 = arith.constant 0 : i32
    %c0_i32_1 = arith.constant 0 : i32
    return %c0_i32, %c0_i32_0 : i32, i32
  }
  func.func @transform_4(%arg0: i32) -> (i32, i32) {
    %c0_i32 = arith.constant 0 : i32
    %c0_i32_0 = arith.constant 0 : i32
    %c0_i32_1 = arith.constant 0 : i32
    return %c0_i32, %c0_i32_0 : i32, i32
  }
  func.func @transform_5(%arg0: i32) -> (i32, i32, i32) {
    %c0_i32 = arith.constant 0 : i32
    %c0_i32_0 = arith.constant 0 : i32
    %c0_i32_1 = arith.constant 0 : i32
    return %arg0, %c0_i32, %c0_i32_0 : i32, i32, i32
  }
  func.func @transform_6(%arg0: i32) -> (i32, i32, i32) {
    %c0_i32 = arith.constant 0 : i32
    %c0_i32_0 = arith.constant 0 : i32
    %c0_i32_1 = arith.constant 0 : i32
    return %arg0, %c0_i32, %c0_i32_0 : i32, i32, i32
  }
  func.func @transform_7(%arg0: i32) -> (i32, i32, i32) {
    %c0_i32 = arith.constant 0 : i32
    %c0_i32_0 = arith.constant 0 : i32
    %c0_i32_1 = arith.constant 0 : i32
    return %arg0, %c0_i32, %c0_i32_0 : i32, i32, i32
  }
  func.func @transform_8(%arg0: i32) -> (i32, i32, i32) {
    %c0_i32 = arith.constant 0 : i32
    %c0_i32_0 = arith.constant 0 : i32
    %c0_i32_1 = arith.constant 0 : i32
    return %arg0, %c0_i32, %c0_i32_0 : i32, i32, i32
  }
}

</mosaic_0001>

<llo_original>
// kernel: tpu_custom_call.1
$region0: #{tpu_custom_call.1}
  #allocation0 [shape = 'u32[]', space=smem, size = 0x4, offset = 0x4, fixed_abs, tag = 'smem constant byte address 0x4 - core index']
  #allocation1 [shape = 'u32[72,128]{1,0:T(1,128)}', space=vmem, size = 0x9000, scoped, tag = 'internal scratch']
  %s0 = inlined_call_operand.vmem [shape: f32[2,2,9,128], index: 0, kind: input, shape index: {}]
  %s1 = inlined_call_operand.hbm [shape: f32[3,128,128], index: 1, kind: input, shape index: {}]
  %s2 = inlined_call_operand.vmem [shape: f32[1,128], index: 2, kind: input, shape index: {}]
  %s3 = inlined_call_operand.hbm [shape: f32[128,128], index: 3, kind: input, shape index: {}]
  %s4 = inlined_call_operand.vmem [shape: f32[1,128], index: 4, kind: input, shape index: {}]
  %s5 = inlined_call_operand.hbm [shape: f32[2,8,128], index: 5, kind: output, shape index: {0}]
  %s6 = inlined_call_operand.hbm [shape: f32[2,8,128], index: 6, kind: output, shape index: {1}]
  %s7 = inlined_call_operand.hbm [shape: f32[1,1,128], index: 7, kind: output, shape index: {2}]
  %s8 = inlined_call_operand.hbm [shape: f32[1,1,128], index: 8, kind: output, shape index: {3}]
  %9 = xla_tuple %s5, %s6, %s7, %s8
  %s10 = sld [smem:[#allocation0]]
  $region62: #{tpu_custom_call.1} parent=0
    _
  %s12 = ssub.s32 1, %s10
  %s13 = scalar_select 0, %s12, %s10
  $region1: #{tpu_custom_call.1} parent=0
    #allocation2 [shape = 'u8[196608]{0}', space=vmem, size = 0x30000, scoped, tag = 'input window, operand 1, single buffered']
    #allocation3 [shape = 's32[1]{0}', space=sflag, size = 0x4, scoped, tag = 'scoped memory for tpu_custom_call.1']
    #allocation4 [shape = 's32[1]{0}', space=sflag, size = 0x4, scoped, tag = 'scoped memory for tpu_custom_call.1']
    #allocation5 [shape = 'u8[65536]{0}', space=vmem, size = 0x10000, scoped, tag = 'input window, operand 3, single buffered']
    #allocation6 [shape = 's32[1]{0}', space=sflag, size = 0x4, scoped, tag = 'scoped memory for tpu_custom_call.1']
    #allocation7 [shape = 'u8[8192]{0}', space=vmem, size = 0x2000, scoped, tag = 'output window, operand 0, single buffered']
    #allocation8 [shape = 'u8[8192]{0}', space=vmem, size = 0x2000, scoped, tag = 'output window, operand 1, single buffered']
    #allocation9 [shape = 's32[1]{0}', space=sflag, size = 0x4, scoped, tag = 'scoped memory for tpu_custom_call.1']
    #allocation10 [shape = 'u8[512]{0}', space=vmem, size = 0x400, scoped, tag = 'output window, operand 2, single buffered']
    #allocation11 [shape = 'u8[512]{0}', space=vmem, size = 0x400, scoped, tag = 'output window, operand 3, single buffered']
    #allocation12 [shape = 's32[1]{0}', space=sflag, size = 0x4, scoped, tag = 'scoped memory for tpu_custom_call.1']
    %14 = vsyncpa [#allocation3], 0
    %15 = vsyncpa [#allocation6], 0
    %16 = vsyncpa [#allocation4], 0
    %17 = vsyncpa [#allocation9], 0
    %18 = vsyncpa [#allocation12], 0
    // Predicated region
    $region2: #{tpu_custom_call.1} parent=1 // pred_check
      _
    $region3: #{tpu_custom_call.1} parent=1 // pred_check_branch
      %20 = sbr.rel (0) target = $region5
    $region4: #{tpu_custom_call.1} parent=1 // pred_region
      _
    $region5: #{tpu_custom_call.1} parent=1 // pred_fallthru
      _
    // Predicated region
    $region6: #{tpu_custom_call.1} parent=1 // pred_check
      _
    $region7: #{tpu_custom_call.1} parent=1 // pred_check_branch
      %22 = sbr.rel (0) target = $region9
    $region8: #{tpu_custom_call.1} parent=1 // pred_region
      %24 = vsyncadd [#allocation3], 0
      %s25 = sshll.u32 %s1, 4
      %s26 = int_to_ptr.hbm [resolvable:$true] %s25
      %s27 = sshll.u32 [#allocation2], 4
      %s28 = int_to_ptr.vmem [resolvable:$true] %s27
      %33 = dma.hbm_to_vmem [thread:$0]  %s26, 6144, %s28, [#allocation3], 128, 128, 8
    $region9: #{tpu_custom_call.1} parent=1 // pred_fallthru
      _
    // Predicated region
    $region10: #{tpu_custom_call.1} parent=1 // pred_check
      _
    $region11: #{tpu_custom_call.1} parent=1 // pred_check_branch
      %35 = sbr.rel (0) target = $region13
    $region12: #{tpu_custom_call.1} parent=1 // pred_region
      _
    $region13: #{tpu_custom_call.1} parent=1 // pred_fallthru
      _
    // Predicated region
    $region14: #{tpu_custom_call.1} parent=1 // pred_check
      _
    $region15: #{tpu_custom_call.1} parent=1 // pred_check_branch
      %37 = sbr.rel (0) target = $region17
    $region16: #{tpu_custom_call.1} parent=1 // pred_region
      %39 = vsyncadd [#allocation6], 0
      %s40 = sshll.u32 %s3, 4
      %s41 = int_to_ptr.hbm [resolvable:$true] %s40
      %s42 = sshll.u32 [#allocation5], 4
      %s43 = int_to_ptr.vmem [resolvable:$true] %s42
      %48 = dma.hbm_to_vmem [thread:$0]  %s41, 2048, %s43, [#allocation6], 128, 128, 8
    $region17: #{tpu_custom_call.1} parent=1 // pred_fallthru
      _
    // Predicated region
    $region18: #{tpu_custom_call.1} parent=1 // pred_check
      _
    $region19: #{tpu_custom_call.1} parent=1 // pred_check_branch
      %50 = sbr.rel (0) target = $region21
    $region20: #{tpu_custom_call.1} parent=1 // pred_region
      _
    $region21: #{tpu_custom_call.1} parent=1 // pred_fallthru
      _
    // Predicated region
    $region22: #{tpu_custom_call.1} parent=1 // pred_check
      _
    $region23: #{tpu_custom_call.1} parent=1 // pred_check_branch
      %52 = sbr.rel (0) target = $region25
    $region24: #{tpu_custom_call.1} parent=1 // pred_region
      %54 = dma.done [#allocation3], 6144
    $region25: #{tpu_custom_call.1} parent=1 // pred_fallthru
      _
    // Predicated region
    $region26: #{tpu_custom_call.1} parent=1 // pred_check
      _
    $region27: #{tpu_custom_call.1} parent=1 // pred_check_branch
      %56 = sbr.rel (0) target = $region29
    $region28: #{tpu_custom_call.1} parent=1 // pred_region
      %58 = dma.done [#allocation6], 2048
    $region29: #{tpu_custom_call.1} parent=1 // pred_fallthru
      _
    %v59 = vld [vmem:[%s0] sm:$0xff]
    %v60 = vld [vmem:[%s0 + $0x8] sm:$0x1]
    %v61 = vld [vmem:[%s0 + $0x10] sm:$0xff]
    %v62 = vld [vmem:[%s0 + $0x20] sm:$0xff]
    %v63 = vld [vmem:[%s0 + $0x28] sm:$0x1]
    %v64 = vld [vmem:[%s0 + $0x30] sm:$0xff]
    %v65 = vld [vmem:[#allocation2] sm:$0xff]
    %v66 = vld [vmem:[#allocation2 + $0x8] sm:$0xff]
    %v67 = vld [vmem:[#allocation2 + $0x10] sm:$0xff]
    %v68 = vld [vmem:[#allocation2 + $0x18] sm:$0xff]
    %v69 = vld [vmem:[#allocation2 + $0x20] sm:$0xff]
    %v70 = vld [vmem:[#allocation2 + $0x28] sm:$0xff]
    %v71 = vld [vmem:[#allocation2 + $0x30] sm:$0xff]
    %v72 = vld [vmem:[#allocation2 + $0x38] sm:$0xff]
    %v73 = vld [vmem:[#allocation2 + $0x40] sm:$0xff]
    %v74 = vld [vmem:[#allocation2 + $0x48] sm:$0xff]
    %v75 = vld [vmem:[#allocation2 + $0x50] sm:$0xff]
    %v76 = vld [vmem:[#allocation2 + $0x58] sm:$0xff]
    %v77 = vld [vmem:[#allocation2 + $0x60] sm:$0xff]
    %v78 = vld [vmem:[#allocation2 + $0x68] sm:$0xff]
    %v79 = vld [vmem:[#allocation2 + $0x70] sm:$0xff]
    %v80 = vld [vmem:[#allocation2 + $0x78] sm:$0xff]
    %v81 = vld [vmem:[#allocation2 + $0x80] sm:$0xff]
    %v82 = vld [vmem:[#allocation2 + $0x88] sm:$0xff]
    %v83 = vld [vmem:[#allocation2 + $0x90] sm:$0xff]
    %v84 = vld [vmem:[#allocation2 + $0x98] sm:$0xff]
    %v85 = vld [vmem:[#allocation2 + $0xa0] sm:$0xff]
    %v86 = vld [vmem:[#allocation2 + $0xa8] sm:$0xff]
    %v87 = vld [vmem:[#allocation2 + $0xb0] sm:$0xff]
    %v88 = vld [vmem:[#allocation2 + $0xb8] sm:$0xff]
    %v89 = vld [vmem:[#allocation2 + $0xc0] sm:$0xff]
    %v90 = vld [vmem:[#allocation2 + $0xc8] sm:$0xff]
    %v91 = vld [vmem:[#allocation2 + $0xd0] sm:$0xff]
    %v92 = vld [vmem:[#allocation2 + $0xd8] sm:$0xff]
    %v93 = vld [vmem:[#allocation2 + $0xe0] sm:$0xff]
    %v94 = vld [vmem:[#allocation2 + $0xe8] sm:$0xff]
    %v95 = vld [vmem:[#allocation2 + $0xf0] sm:$0xff]
    %v96 = vld [vmem:[#allocation2 + $0xf8] sm:$0xff]
    %v97 = vld [vmem:[#allocation2 + $0x100] sm:$0xff]
    %v98 = vld [vmem:[#allocation2 + $0x108] sm:$0xff]
    %v99 = vld [vmem:[#allocation2 + $0x110] sm:$0xff]
    %v100 = vld [vmem:[#allocation2 + $0x118] sm:$0xff]
    %v101 = vld [vmem:[#allocation2 + $0x120] sm:$0xff]
    %v102 = vld [vmem:[#allocation2 + $0x128] sm:$0xff]
    %v103 = vld [vmem:[#allocation2 + $0x130] sm:$0xff]
    %v104 = vld [vmem:[#allocation2 + $0x138] sm:$0xff]
    %v105 = vld [vmem:[#allocation2 + $0x140] sm:$0xff]
    %v106 = vld [vmem:[#allocation2 + $0x148] sm:$0xff]
    %v107 = vld [vmem:[#allocation2 + $0x150] sm:$0xff]
    %v108 = vld [vmem:[#allocation2 + $0x158] sm:$0xff]
    %v109 = vld [vmem:[#allocation2 + $0x160] sm:$0xff]
    %v110 = vld [vmem:[#allocation2 + $0x168] sm:$0xff]
    %v111 = vld [vmem:[#allocation2 + $0x170] sm:$0xff]
    %v112 = vld [vmem:[#allocation2 + $0x178] sm:$0xff]
    %113 = vmatpush.msra.mxu0 %v96
    %114 = vmatpush.msra.mxu0 %v95
    %115 = vmatpush.msra.mxu0 %v94
    %116 = vmatpush.msra.mxu0 %v93
    %117 = vmatpush.msra.mxu0 %v92
    %118 = vmatpush.msra.mxu0 %v91
    %119 = vmatpush.msra.mxu0 %v90
    %120 = vmatpush.msra.mxu0 %v89
    %121 = vmatpush.msra.mxu0 %v88
    %122 = vmatpush.msra.mxu0 %v87
    %123 = vmatpush.msra.mxu0 %v86
    %124 = vmatpush.msra.mxu0 %v85
    %125 = vmatpush.msra.mxu0 %v84
    %126 = vmatpush.msra.mxu0 %v83
    %127 = vmatpush.msra.mxu0 %v82
    %128 = vmatpush.msra.mxu0 %v81
    %129 = vmatmul.f32.gmra.mxu0 %v61
    %v130 = vpop.f32.mrf.mxu0
    %v131 = vadd.f32 0.0, %v130
    %132 = vmatmul.f32.gmra.mxu0 %v64
    %v133 = vpop.f32.mrf.mxu0
    %v134 = vadd.f32 0.0, %v133
    %135 = vdwg.mxu0
    %136 = vmatpush.msra.mxu0 %v80
    %137 = vmatpush.msra.mxu0 %v79
    %138 = vmatpush.msra.mxu0 %v78
    %139 = vmatpush.msra.mxu0 %v77
    %140 = vmatpush.msra.mxu0 %v76
    %141 = vmatpush.msra.mxu0 %v75
    %142 = vmatpush.msra.mxu0 %v74
    %143 = vmatpush.msra.mxu0 %v73
    %144 = vmatpush.msra.mxu0 %v72
    %145 = vmatpush.msra.mxu0 %v71
    %146 = vmatpush.msra.mxu0 %v70
    %147 = vmatpush.msra.mxu0 %v69
    %148 = vmatpush.msra.mxu0 %v68
    %149 = vmatpush.msra.mxu0 %v67
    %150 = vmatpush.msra.mxu0 %v66
    %151 = vmatpush.msra.mxu0 %v65
    %152 = vmatmul.f32.gmra.mxu0 %v59
    %v153 = vpop.f32.mrf.mxu0
    %v154 = vadd.f32 %v131, %v153
    %155 = vmatmul.f32.gmra.mxu0 %v62
    %v156 = vpop.f32.mrf.mxu0
    %v157 = vadd.f32 %v134, %v156
    %158 = vdwg.mxu0
    %vm163 = vcmask 1046528
    %v164 = vrot.slane %v59, 1
    %v165 = vrot.slane %v60, 1
    %v166 = vsel %vm163, %v164, %v165
    %v167 = vrot.slane %v62, 1
    %v168 = vrot.slane %v63, 1
    %v169 = vsel %vm163, %v167, %v168
    %172 = vmatpush.msra.mxu0 %v112
    %173 = vmatpush.msra.mxu0 %v111
    %174 = vmatpush.msra.mxu0 %v110
    %175 = vmatpush.msra.mxu0 %v109
    %176 = vmatpush.msra.mxu0 %v108
    %177 = vmatpush.msra.mxu0 %v107
    %178 = vmatpush.msra.mxu0 %v106
    %179 = vmatpush.msra.mxu0 %v105
    %180 = vmatpush.msra.mxu0 %v104
    %181 = vmatpush.msra.mxu0 %v103
    %182 = vmatpush.msra.mxu0 %v102
    %183 = vmatpush.msra.mxu0 %v101
    %184 = vmatpush.msra.mxu0 %v100
    %185 = vmatpush.msra.mxu0 %v99
    %186 = vmatpush.msra.mxu0 %v98
    %187 = vmatpush.msra.mxu0 %v97
    %188 = vmatmul.f32.gmra.mxu0 %v166
    %v189 = vpop.f32.mrf.mxu0
    %v190 = vadd.f32 0.0, %v189
    %191 = vmatmul.f32.gmra.mxu0 %v169
    %v192 = vpop.f32.mrf.mxu0
    %v193 = vadd.f32 0.0, %v192
    %194 = vdwg.mxu0
    %v195 = vadd.f32 %v154, %v190
    %v196 = vadd.f32 %v157, %v193
    %v197 = vld [vmem:[%s2] sm:$0x1]
    %v199 = vperm.slane %v197, 0
    %v201 = vadd.f32 %v195, %v199
    %v202 = vadd.f32 %v196, %v199
    %203 = vst [vmem:[#allocation7] sm:$0xff] %v201
    %204 = vst [vmem:[#allocation7 + $0x8] sm:$0xff] %v202
    %v205 = vadd.f32 %v201, %v202
    %v206 = vrot.slane %v205, 4
    %v207 = vadd.f32 %v205, %v206
    %v208 = vrot.slane %v207, 2
    %v209 = vadd.f32 %v207, %v208
    %v210 = vrot.slane %v209, 1
    %v211 = vadd.f32 %v209, %v210
    %212 = vst [vmem:[#allocation10] sm:$0x1] %v211
    %v213 = vmul.f32 %v201, %v201
    %v214 = vmul.f32 %v202, %v202
    %v215 = vadd.f32 %v213, %v214
    %v216 = vrot.slane %v215, 4
    %v217 = vadd.f32 %v215, %v216
    %v218 = vrot.slane %v217, 2
    %v219 = vadd.f32 %v217, %v218
    %v220 = vrot.slane %v219, 1
    %v221 = vadd.f32 %v219, %v220
    %222 = vst [vmem:[#allocation11] sm:$0x1] %v221
    %v223 = vld [vmem:[#allocation5] sm:$0xff]
    %v224 = vld [vmem:[#allocation5 + $0x8] sm:$0xff]
    %v225 = vld [vmem:[#allocation5 + $0x10] sm:$0xff]
    %v226 = vld [vmem:[#allocation5 + $0x18] sm:$0xff]
    %v227 = vld [vmem:[#allocation5 + $0x20] sm:$0xff]
    %v228 = vld [vmem:[#allocation5 + $0x28] sm:$0xff]
    %v229 = vld [vmem:[#allocation5 + $0x30] sm:$0xff]
    %v230 = vld [vmem:[#allocation5 + $0x38] sm:$0xff]
    %v231 = vld [vmem:[#allocation5 + $0x40] sm:$0xff]
    %v232 = vld [vmem:[#allocation5 + $0x48] sm:$0xff]
    %v233 = vld [vmem:[#allocation5 + $0x50] sm:$0xff]
    %v234 = vld [vmem:[#allocation5 + $0x58] sm:$0xff]
    %v235 = vld [vmem:[#allocation5 + $0x60] sm:$0xff]
    %v236 = vld [vmem:[#allocation5 + $0x68] sm:$0xff]
    %v237 = vld [vmem:[#allocation5 + $0x70] sm:$0xff]
    %v238 = vld [vmem:[#allocation5 + $0x78] sm:$0xff]
    %v239 = vld [vmem:[%s4] sm:$0x1]
    %v241 = vperm.slane %v239, 0
    %243 = vmatpush.msra.mxu0 %v238
    %244 = vmatpush.msra.mxu0 %v237
    %245 = vmatpush.msra.mxu0 %v236
    %246 = vmatpush.msra.mxu0 %v235
    %247 = vmatpush.msra.mxu0 %v234
    %248 = vmatpush.msra.mxu0 %v233
    %249 = vmatpush.msra.mxu0 %v232
    %250 = vmatpush.msra.mxu0 %v231
    %251 = vmatpush.msra.mxu0 %v230
    %252 = vmatpush.msra.mxu0 %v229
    %253 = vmatpush.msra.mxu0 %v228
    %254 = vmatpush.msra.mxu0 %v227
    %255 = vmatpush.msra.mxu0 %v226
    %256 = vmatpush.msra.mxu0 %v225
    %257 = vmatpush.msra.mxu0 %v224
    %258 = vmatpush.msra.mxu0 %v223
    %259 = vmatmul.f32.gmra.mxu0 %v61
    %v260 = vpop.f32.mrf.mxu0
    %v261 = vadd.f32 %v241, %v260
    %262 = vmatmul.f32.gmra.mxu0 %v64
    %v263 = vpop.f32.mrf.mxu0
    %v264 = vadd.f32 %v241, %v263
    %265 = vdwg.mxu0
    %266 = vst [vmem:[#allocation8] sm:$0xff] %v261
    %267 = vst [vmem:[#allocation8 + $0x8] sm:$0xff] %v264
    // Predicated region
    $region30: #{tpu_custom_call.1} parent=1 // pred_check
      _
    $region31: #{tpu_custom_call.1} parent=1 // pred_check_branch
      %269 = sbr.rel (0) target = $region33
    $region32: #{tpu_custom_call.1} parent=1 // pred_region
      %271 = vsyncadd [#allocation4], 0
      %s272 = sshll.u32 [#allocation7], 4
      %s273 = int_to_ptr.vmem [resolvable:$true] %s272
      %s274 = sshll.u32 %s5, 4
      %s275 = int_to_ptr.hbm [resolvable:$true] %s274
      %280 = dma.vmem_to_hbm [thread:$0]  %s273, 256, %s275, [#allocation4], 128, 128, 8
    $region33: #{tpu_custom_call.1} parent=1 // pred_fallthru
      _
    // Predicated region
    $region34: #{tpu_custom_call.1} parent=1 // pred_check
      _
    $region35: #{tpu_custom_call.1} parent=1 // pred_check_branch
      %282 = sbr.rel (0) target = $region37
    $region36: #{tpu_custom_call.1} parent=1 // pred_region
      %284 = vsyncadd [#allocation9], 0
      %s285 = sshll.u32 [#allocation8], 4
      %s286 = int_to_ptr.vmem [resolvable:$true] %s285
      %s287 = sshll.u32 %s6, 4
      %s288 = int_to_ptr.hbm [resolvable:$true] %s287
      %293 = dma.vmem_to_hbm [thread:$0]  %s286, 256, %s288, [#allocation9], 128, 128, 8
    $region37: #{tpu_custom_call.1} parent=1 // pred_fallthru
      _
    // Predicated region
    $region38: #{tpu_custom_call.1} parent=1 // pred_check
      _
    $region39: #{tpu_custom_call.1} parent=1 // pred_check_branch
      %295 = sbr.rel (0) target = $region41
    $region40: #{tpu_custom_call.1} parent=1 // pred_region
      %297 = vsyncadd [#allocation9], 0
      %s299 = sshll.u32 [#allocation10], 4
      %s300 = int_to_ptr.vmem [resolvable:$true] %s299
      %s301 = sshll.u32 %s7, 4
      %s302 = int_to_ptr.hbm [resolvable:$true] %s301
      %304 = dma.vmem_to_hbm [thread:$0]  %s300, 16, %s302, [#allocation9]
    $region41: #{tpu_custom_call.1} parent=1 // pred_fallthru
      _
    // Predicated region
    $region42: #{tpu_custom_call.1} parent=1 // pred_check
      _
    $region43: #{tpu_custom_call.1} parent=1 // pred_check_branch
      %306 = sbr.rel (0) target = $region45
    $region44: #{tpu_custom_call.1} parent=1 // pred_region
      %308 = vsyncadd [#allocation12], 0
      %s310 = sshll.u32 [#allocation11], 4
      %s311 = int_to_ptr.vmem [resolvable:$true] %s310
      %s312 = sshll.u32 %s8, 4
      %s313 = int_to_ptr.hbm [resolvable:$true] %s312
      %315 = dma.vmem_to_hbm [thread:$0]  %s311, 16, %s313, [#allocation12]
    $region45: #{tpu_custom_call.1} parent=1 // pred_fallthru
      _
    // Predicated region
    $region46: #{tpu_custom_call.1} parent=1 // pred_check
      _
    $region47: #{tpu_custom_call.1} parent=1 // pred_check_branch
      %317 = sbr.rel (0) target = $region49
    $region48: #{tpu_custom_call.1} parent=1 // pred_region
      %319 = dma.done [#allocation4], 256
    $region49: #{tpu_custom_call.1} parent=1 // pred_fallthru
      _
    // Predicated region
    $region50: #{tpu_custom_call.1} parent=1 // pred_check
      _
    $region51: #{tpu_custom_call.1} parent=1 // pred_check_branch
      %321 = sbr.rel (0) target = $region53
    $region52: #{tpu_custom_call.1} parent=1 // pred_region
      %323 = dma.done [#allocation9], 256
    $region53: #{tpu_custom_call.1} parent=1 // pred_fallthru
      _
    // Predicated region
    $region54: #{tpu_custom_call.1} parent=1 // pred_check
      _
    $region55: #{tpu_custom_call.1} parent=1 // pred_check_branch
      %325 = sbr.rel (0) target = $region57
    $region56: #{tpu_custom_call.1} parent=1 // pred_region
      %327 = dma.done [#allocation9], 16
    $region57: #{tpu_custom_call.1} parent=1 // pred_fallthru
      _
    // Predicated region
    $region58: #{tpu_custom_call.1} parent=1 // pred_check
      _
    $region59: #{tpu_custom_call.1} parent=1 // pred_check_branch
      %329 = sbr.rel (0) target = $region61
    $region60: #{tpu_custom_call.1} parent=1 // pred_region
      %331 = dma.done [#allocation12], 16
    $region61: #{tpu_custom_call.1} parent=1 // pred_fallthru
      _
    %332 = vsyncpa [#allocation3], 1
    %333 = vsyncpa [#allocation6], 1
    %334 = vsyncpa [#allocation4], 1
    %335 = vsyncpa [#allocation9], 1
    %336 = vsyncpa [#allocation12], 1

</llo_original>
